<compile_context>
chip_gen: v5e
topology: v5e:2x2
jax: 0.10.0
libtpu: 0.0.40
codegen_flags: <defaults>
</compile_context>

<pallas_src>
import jax
import jax.numpy as jnp
from jax.experimental import pallas as pl
from jax.experimental.pallas import tpu as pltpu

C_IN, C_OUT = 5, 1
KH, KW = 2, 3
STRIDE_H, STRIDE_W = 2, 1
NEG_SLOPE = 0.165


def _convt_leaky_kernel(w_ref, b_ref, x_ref, o_ref):
    # w_ref : SMEM (C_IN*KH*KW,) flattened weights, kw already flipped
    # b_ref : SMEM (1,)
    # x_ref : VMEM (bt, C_IN, H, W)            -- unpadded input block
    # o_ref : VMEM (bt, 1, KH*H, W + KW - 1)   -- final NCHW output block
    bt, c_in, h, w_in = x_ref.shape
    w_out = o_ref.shape[3]

    x = x_ref[...]  # (bt, c_in, h, w_in)

    # Bias splat hoisted out of all loops (JAX does not CSE broadcast_in_dim).
    bias_v = jnp.full((bt, h, w_out), b_ref[0], dtype=jnp.float32)
    # One accumulator per kh; each output row oh gets contributions from
    # exactly one kh (= oh % 2) because KH == STRIDE_H.
    accs = [bias_v for _ in range(KH)]

    # Zero edge columns used to build the shifted taps in registers.
    z1 = jnp.zeros((bt, h, 1), dtype=jnp.float32)
    z2 = jnp.zeros((bt, h, 2), dtype=jnp.float32)

    for ci in range(c_in):
        xc = x[:, ci, :, :]  # (bt, h, w_in)
        # taps[kwp] == zero-padded-x[..., kwp : kwp + w_out]  (pad = KW-1 = 2)
        taps = (
            jnp.concatenate([z2, xc], axis=-1),        # kwp = 0
            jnp.concatenate([z1, xc, z1], axis=-1),    # kwp = 1
            jnp.concatenate([xc, z2], axis=-1),        # kwp = 2
        )
        for kh in range(KH):
            base = ci * (KH * KW) + kh * KW
            contrib = taps[0] * w_ref[base]
            for kwp in range(1, KW):
                contrib = contrib + taps[kwp] * w_ref[base + kwp]
            accs[kh] = accs[kh] + contrib

    # In-register row interleave: out[:, 2*ih + kh, :] = accs[kh][:, ih, :].
    stacked = jnp.stack(accs, axis=2)                  # (bt, h, KH, w_out)
    y = stacked.reshape(bt, 1, KH * h, w_out)
    y = jnp.where(y > 0.0, y, y * NEG_SLOPE)
    o_ref[...] = y                                     # one contiguous store


def conv_transpose_leaky(x, w, b):
    """x: (N, C_IN, H, W) f32; w: (C_IN, C_OUT, KH, KW) f32; b: (C_OUT,) f32."""
    n, c, h, wd = x.shape
    assert c == C_IN
    # The per-kh row decomposition requires each output row to come from
    # exactly one input row.
    assert KH == STRIDE_H, "kernel decomposition requires kernel_h == stride_h"

    h_out = (h - 1) * STRIDE_H + KH          # == KH * h
    w_out = (wd - 1) * STRIDE_W + KW         # == wd + KW - 1

    # Flip along kw and flatten: wf[ci*KH*KW + kh*KW + kw'] = w[ci, 0, kh, KW-1-kw']
    wf = jnp.asarray(w[:, 0, :, ::-1], jnp.float32).reshape(-1)
    bf = jnp.asarray(b, jnp.float32)

    # VMEM-budgeted batch blocking: 1 grid step at small sizes (the kernel is
    # launch/step-overhead bound there), more steps only when a block would
    # blow the budget (keeps v7x's 64 MiB VMEM safe and restores pipelining).
    bytes_per_image = 4 * (C_IN * h * wd + C_OUT * h_out * w_out)
    budget = 8 * 1024 * 1024
    n_blocks = n
    for cand in range(1, n + 1):
        if n % cand == 0 and (n // cand) * bytes_per_image * 2 <= budget:
            n_blocks = cand
            break
    bt = n // n_blocks

    out = pl.pallas_call(
        _convt_leaky_kernel,
        out_shape=jax.ShapeDtypeStruct((n, C_OUT, h_out, w_out), jnp.float32),
        grid_spec=pltpu.PrefetchScalarGridSpec(
            num_scalar_prefetch=0,
            grid=(n_blocks,),
            in_specs=[
                pl.BlockSpec(memory_space=pltpu.MemorySpace.SMEM),   # weights
                pl.BlockSpec(memory_space=pltpu.MemorySpace.SMEM),   # bias
                pl.BlockSpec((bt, c, h, wd), lambda i: (i, 0, 0, 0)),
            ],
            out_specs=pl.BlockSpec((bt, C_OUT, h_out, w_out), lambda i: (i, 0, 0, 0)),
        ),
        compiler_params=pltpu.CompilerParams(
            dimension_semantics=(("parallel",) if n_blocks > 1 else ("arbitrary",)),
        ),
    )(wf, bf, x)
    return out


if __name__ == "__main__":
    key = jax.random.PRNGKey(0)
    kx, kwt, kb = jax.random.split(key, 3)

    # small shapes consistent with the module (channels fixed at 5 by the conv)
    N, H, W = 2, 16, 16
    x = jax.random.normal(kx, (N, C_IN, H, W), dtype=jnp.float32)

    # deterministic parameter init (PyTorch-style uniform bound)
    fan_in = C_IN * KH * KW
    bound = 1.0 / (fan_in ** 0.5)
    w = jax.random.uniform(kwt, (C_IN, C_OUT, KH, KW), jnp.float32, -bound, bound)
    b = jax.random.uniform(kb, (C_OUT,), jnp.float32, -bound, bound)

    y = conv_transpose_leaky(x, w, b)
    y = jax.block_until_ready(y)

    # pure-JAX reference: transposed conv == lhs-dilated conv with rotated kernel
    w_rot = jnp.transpose(w, (1, 0, 2, 3))[:, :, ::-1, ::-1]
    ref = jax.lax.conv_general_dilated(
        x, w_rot, window_strides=(1, 1),
        padding=[(KH - 1, KH - 1), (KW - 1, KW - 1)],
        lhs_dilation=(STRIDE_H, STRIDE_W),
        dimension_numbers=("NCHW", "OIHW", "NCHW"),
    ) + b.reshape(1, -1, 1, 1)
    ref = jnp.where(ref > 0.0, ref, ref * NEG_SLOPE)

    assert y.shape == (N, C_OUT, (H - 1) * STRIDE_H + KH, (W - 1) * STRIDE_W + KW)
    assert jnp.allclose(y, ref, atol=1e-5, rtol=1e-5), "mismatch vs reference"
    print("KERNEL_OK")
</pallas_src>

<mosaic_0001>
module attributes {stable_mosaic.version = 11 : i64} {
  func.func @_convt_leaky_kernel(%arg0: i32, %arg1: memref<30xf32, #tpu.memory_space<smem>>, %arg2: memref<1xf32, #tpu.memory_space<smem>>, %arg3: memref<2x5x16x16xf32, #tpu.memory_space<vmem>>, %arg4: memref<2x1x32x18xf32, #tpu.memory_space<vmem>>) attributes {dimension_semantics = [#tpu.dimension_semantics<arbitrary>], iteration_bounds = array<i64: 1>, scalar_prefetch = 0 : i64, scratch_operands = 0 : i64, tpu.core_type = #tpu.core_type<tc>, window_params = [{transform_indices = @transform_0, window_bounds = array<i64: 30>}, {transform_indices = @transform_1, window_bounds = array<i64: 1>}, {transform_indices = @transform_2, window_bounds = array<i64: 2, 5, 16, 16>}, {transform_indices = @transform_3, window_bounds = array<i64: 2, 1, 32, 18>}]} {
    %c0 = arith.constant 0 : index
    %c0_0 = arith.constant 0 : index
    %c0_1 = arith.constant 0 : index
    %c0_2 = arith.constant 0 : index
    %0 = vector.load %arg3[%c0, %c0_0, %c0_1, %c0_2] : memref<2x5x16x16xf32, #tpu.memory_space<vmem>>, vector<2x5x16x16xf32>
    %c0_3 = arith.constant 0 : index
    %1 = memref.load %arg2[%c0_3] : memref<1xf32, #tpu.memory_space<smem>>
    %2 = vector.broadcast %1 : f32 to vector<2x16x18xf32>
    %cst = arith.constant 0.000000e+00 : f32
    %3 = vector.broadcast %cst : f32 to vector<2x16x1xf32>
    %cst_4 = arith.constant 0.000000e+00 : f32
    %4 = vector.broadcast %cst_4 : f32 to vector<2x16x2xf32>
    %5 = vector.extract_strided_slice %0 {offsets = [0, 0, 0, 0], sizes = [2, 1, 16, 16], strides = [1, 1, 1, 1]} : vector<2x5x16x16xf32> to vector<2x1x16x16xf32>
    %6 = vector.shape_cast %5 : vector<2x1x16x16xf32> to vector<2x16x16xf32>
    %7 = tpu.concatenate %4, %6 in 2 : vector<2x16x2xf32>, vector<2x16x16xf32> -> vector<2x16x18xf32>
    %8 = tpu.concatenate %3, %6, %3 in 2 : vector<2x16x1xf32>, vector<2x16x16xf32>, vector<2x16x1xf32> -> vector<2x16x18xf32>
    %9 = tpu.concatenate %6, %4 in 2 : vector<2x16x16xf32>, vector<2x16x2xf32> -> vector<2x16x18xf32>
    %c0_5 = arith.constant 0 : index
    %10 = memref.load %arg1[%c0_5] : memref<30xf32, #tpu.memory_space<smem>>
    %11 = vector.broadcast %10 : f32 to vector<2x16x18xf32>
    %12 = arith.mulf %7, %11 : vector<2x16x18xf32>
    %c1 = arith.constant 1 : index
    %13 = memref.load %arg1[%c1] : memref<30xf32, #tpu.memory_space<smem>>
    %14 = vector.broadcast %13 : f32 to vector<2x16x18xf32>
    %15 = arith.mulf %8, %14 : vector<2x16x18xf32>
    %16 = arith.addf %12, %15 : vector<2x16x18xf32>
    %c2 = arith.constant 2 : index
    %17 = memref.load %arg1[%c2] : memref<30xf32, #tpu.memory_space<smem>>
    %18 = vector.broadcast %17 : f32 to vector<2x16x18xf32>
    %19 = arith.mulf %9, %18 : vector<2x16x18xf32>
    %20 = arith.addf %16, %19 : vector<2x16x18xf32>
    %21 = arith.addf %2, %20 : vector<2x16x18xf32>
    %c3 = arith.constant 3 : index
    %22 = memref.load %arg1[%c3] : memref<30xf32, #tpu.memory_space<smem>>
    %23 = vector.broadcast %22 : f32 to vector<2x16x18xf32>
    %24 = arith.mulf %7, %23 : vector<2x16x18xf32>
    %c4 = arith.constant 4 : index
    %25 = memref.load %arg1[%c4] : memref<30xf32, #tpu.memory_space<smem>>
    %26 = vector.broadcast %25 : f32 to vector<2x16x18xf32>
    %27 = arith.mulf %8, %26 : vector<2x16x18xf32>
    %28 = arith.addf %24, %27 : vector<2x16x18xf32>
    %c5 = arith.constant 5 : index
    %29 = memref.load %arg1[%c5] : memref<30xf32, #tpu.memory_space<smem>>
    %30 = vector.broadcast %29 : f32 to vector<2x16x18xf32>
    %31 = arith.mulf %9, %30 : vector<2x16x18xf32>
    %32 = arith.addf %28, %31 : vector<2x16x18xf32>
    %33 = arith.addf %2, %32 : vector<2x16x18xf32>
    %34 = vector.extract_strided_slice %0 {offsets = [0, 1, 0, 0], sizes = [2, 1, 16, 16], strides = [1, 1, 1, 1]} : vector<2x5x16x16xf32> to vector<2x1x16x16xf32>
    %35 = vector.shape_cast %34 : vector<2x1x16x16xf32> to vector<2x16x16xf32>
    %36 = tpu.concatenate %4, %35 in 2 : vector<2x16x2xf32>, vector<2x16x16xf32> -> vector<2x16x18xf32>
    %37 = tpu.concatenate %3, %35, %3 in 2 : vector<2x16x1xf32>, vector<2x16x16xf32>, vector<2x16x1xf32> -> vector<2x16x18xf32>
    %38 = tpu.concatenate %35, %4 in 2 : vector<2x16x16xf32>, vector<2x16x2xf32> -> vector<2x16x18xf32>
    %c6 = arith.constant 6 : index
    %39 = memref.load %arg1[%c6] : memref<30xf32, #tpu.memory_space<smem>>
    %40 = vector.broadcast %39 : f32 to vector<2x16x18xf32>
    %41 = arith.mulf %36, %40 : vector<2x16x18xf32>
    %c7 = arith.constant 7 : index
    %42 = memref.load %arg1[%c7] : memref<30xf32, #tpu.memory_space<smem>>
    %43 = vector.broadcast %42 : f32 to vector<2x16x18xf32>
    %44 = arith.mulf %37, %43 : vector<2x16x18xf32>
    %45 = arith.addf %41, %44 : vector<2x16x18xf32>
    %c8 = arith.constant 8 : index
    %46 = memref.load %arg1[%c8] : memref<30xf32, #tpu.memory_space<smem>>
    %47 = vector.broadcast %46 : f32 to vector<2x16x18xf32>
    %48 = arith.mulf %38, %47 : vector<2x16x18xf32>
    %49 = arith.addf %45, %48 : vector<2x16x18xf32>
    %50 = arith.addf %21, %49 : vector<2x16x18xf32>
    %c9 = arith.constant 9 : index
    %51 = memref.load %arg1[%c9] : memref<30xf32, #tpu.memory_space<smem>>
    %52 = vector.broadcast %51 : f32 to vector<2x16x18xf32>
    %53 = arith.mulf %36, %52 : vector<2x16x18xf32>
    %c10 = arith.constant 10 : index
    %54 = memref.load %arg1[%c10] : memref<30xf32, #tpu.memory_space<smem>>
    %55 = vector.broadcast %54 : f32 to vector<2x16x18xf32>
    %56 = arith.mulf %37, %55 : vector<2x16x18xf32>
    %57 = arith.addf %53, %56 : vector<2x16x18xf32>
    %c11 = arith.constant 11 : index
    %58 = memref.load %arg1[%c11] : memref<30xf32, #tpu.memory_space<smem>>
    %59 = vector.broadcast %58 : f32 to vector<2x16x18xf32>
    %60 = arith.mulf %38, %59 : vector<2x16x18xf32>
    %61 = arith.addf %57, %60 : vector<2x16x18xf32>
    %62 = arith.addf %33, %61 : vector<2x16x18xf32>
    %63 = vector.extract_strided_slice %0 {offsets = [0, 2, 0, 0], sizes = [2, 1, 16, 16], strides = [1, 1, 1, 1]} : vector<2x5x16x16xf32> to vector<2x1x16x16xf32>
    %64 = vector.shape_cast %63 : vector<2x1x16x16xf32> to vector<2x16x16xf32>
    %65 = tpu.concatenate %4, %64 in 2 : vector<2x16x2xf32>, vector<2x16x16xf32> -> vector<2x16x18xf32>
    %66 = tpu.concatenate %3, %64, %3 in 2 : vector<2x16x1xf32>, vector<2x16x16xf32>, vector<2x16x1xf32> -> vector<2x16x18xf32>
    %67 = tpu.concatenate %64, %4 in 2 : vector<2x16x16xf32>, vector<2x16x2xf32> -> vector<2x16x18xf32>
    %c12 = arith.constant 12 : index
    %68 = memref.load %arg1[%c12] : memref<30xf32, #tpu.memory_space<smem>>
    %69 = vector.broadcast %68 : f32 to vector<2x16x18xf32>
    %70 = arith.mulf %65, %69 : vector<2x16x18xf32>
    %c13 = arith.constant 13 : index
    %71 = memref.load %arg1[%c13] : memref<30xf32, #tpu.memory_space<smem>>
    %72 = vector.broadcast %71 : f32 to vector<2x16x18xf32>
    %73 = arith.mulf %66, %72 : vector<2x16x18xf32>
    %74 = arith.addf %70, %73 : vector<2x16x18xf32>
    %c14 = arith.constant 14 : index
    %75 = memref.load %arg1[%c14] : memref<30xf32, #tpu.memory_space<smem>>
    %76 = vector.broadcast %75 : f32 to vector<2x16x18xf32>
    %77 = arith.mulf %67, %76 : vector<2x16x18xf32>
    %78 = arith.addf %74, %77 : vector<2x16x18xf32>
    %79 = arith.addf %50, %78 : vector<2x16x18xf32>
    %c15 = arith.constant 15 : index
    %80 = memref.load %arg1[%c15] : memref<30xf32, #tpu.memory_space<smem>>
    %81 = vector.broadcast %80 : f32 to vector<2x16x18xf32>
    %82 = arith.mulf %65, %81 : vector<2x16x18xf32>
    %c16 = arith.constant 16 : index
    %83 = memref.load %arg1[%c16] : memref<30xf32, #tpu.memory_space<smem>>
    %84 = vector.broadcast %83 : f32 to vector<2x16x18xf32>
    %85 = arith.mulf %66, %84 : vector<2x16x18xf32>
    %86 = arith.addf %82, %85 : vector<2x16x18xf32>
    %c17 = arith.constant 17 : index
    %87 = memref.load %arg1[%c17] : memref<30xf32, #tpu.memory_space<smem>>
    %88 = vector.broadcast %87 : f32 to vector<2x16x18xf32>
    %89 = arith.mulf %67, %88 : vector<2x16x18xf32>
    %90 = arith.addf %86, %89 : vector<2x16x18xf32>
    %91 = arith.addf %62, %90 : vector<2x16x18xf32>
    %92 = vector.extract_strided_slice %0 {offsets = [0, 3, 0, 0], sizes = [2, 1, 16, 16], strides = [1, 1, 1, 1]} : vector<2x5x16x16xf32> to vector<2x1x16x16xf32>
    %93 = vector.shape_cast %92 : vector<2x1x16x16xf32> to vector<2x16x16xf32>
    %94 = tpu.concatenate %4, %93 in 2 : vector<2x16x2xf32>, vector<2x16x16xf32> -> vector<2x16x18xf32>
    %95 = tpu.concatenate %3, %93, %3 in 2 : vector<2x16x1xf32>, vector<2x16x16xf32>, vector<2x16x1xf32> -> vector<2x16x18xf32>
    %96 = tpu.concatenate %93, %4 in 2 : vector<2x16x16xf32>, vector<2x16x2xf32> -> vector<2x16x18xf32>
    %c18 = arith.constant 18 : index
    %97 = memref.load %arg1[%c18] : memref<30xf32, #tpu.memory_space<smem>>
    %98 = vector.broadcast %97 : f32 to vector<2x16x18xf32>
    %99 = arith.mulf %94, %98 : vector<2x16x18xf32>
    %c19 = arith.constant 19 : index
    %100 = memref.load %arg1[%c19] : memref<30xf32, #tpu.memory_space<smem>>
    %101 = vector.broadcast %100 : f32 to vector<2x16x18xf32>
    %102 = arith.mulf %95, %101 : vector<2x16x18xf32>
    %103 = arith.addf %99, %102 : vector<2x16x18xf32>
    %c20 = arith.constant 20 : index
    %104 = memref.load %arg1[%c20] : memref<30xf32, #tpu.memory_space<smem>>
    %105 = vector.broadcast %104 : f32 to vector<2x16x18xf32>
    %106 = arith.mulf %96, %105 : vector<2x16x18xf32>
    %107 = arith.addf %103, %106 : vector<2x16x18xf32>
    %108 = arith.addf %79, %107 : vector<2x16x18xf32>
    %c21 = arith.constant 21 : index
    %109 = memref.load %arg1[%c21] : memref<30xf32, #tpu.memory_space<smem>>
    %110 = vector.broadcast %109 : f32 to vector<2x16x18xf32>
    %111 = arith.mulf %94, %110 : vector<2x16x18xf32>
    %c22 = arith.constant 22 : index
    %112 = memref.load %arg1[%c22] : memref<30xf32, #tpu.memory_space<smem>>
    %113 = vector.broadcast %112 : f32 to vector<2x16x18xf32>
    %114 = arith.mulf %95, %113 : vector<2x16x18xf32>
    %115 = arith.addf %111, %114 : vector<2x16x18xf32>
    %c23 = arith.constant 23 : index
    %116 = memref.load %arg1[%c23] : memref<30xf32, #tpu.memory_space<smem>>
    %117 = vector.broadcast %116 : f32 to vector<2x16x18xf32>
    %118 = arith.mulf %96, %117 : vector<2x16x18xf32>
    %119 = arith.addf %115, %118 : vector<2x16x18xf32>
    %120 = arith.addf %91, %119 : vector<2x16x18xf32>
    %121 = vector.extract_strided_slice %0 {offsets = [0, 4, 0, 0], sizes = [2, 1, 16, 16], strides = [1, 1, 1, 1]} : vector<2x5x16x16xf32> to vector<2x1x16x16xf32>
    %122 = vector.shape_cast %121 : vector<2x1x16x16xf32> to vector<2x16x16xf32>
    %123 = tpu.concatenate %4, %122 in 2 : vector<2x16x2xf32>, vector<2x16x16xf32> -> vector<2x16x18xf32>
    %124 = tpu.concatenate %3, %122, %3 in 2 : vector<2x16x1xf32>, vector<2x16x16xf32>, vector<2x16x1xf32> -> vector<2x16x18xf32>
    %125 = tpu.concatenate %122, %4 in 2 : vector<2x16x16xf32>, vector<2x16x2xf32> -> vector<2x16x18xf32>
    %c24 = arith.constant 24 : index
    %126 = memref.load %arg1[%c24] : memref<30xf32, #tpu.memory_space<smem>>
    %127 = vector.broadcast %126 : f32 to vector<2x16x18xf32>
    %128 = arith.mulf %123, %127 : vector<2x16x18xf32>
    %c25 = arith.constant 25 : index
    %129 = memref.load %arg1[%c25] : memref<30xf32, #tpu.memory_space<smem>>
    %130 = vector.broadcast %129 : f32 to vector<2x16x18xf32>
    %131 = arith.mulf %124, %130 : vector<2x16x18xf32>
    %132 = arith.addf %128, %131 : vector<2x16x18xf32>
    %c26 = arith.constant 26 : index
    %133 = memref.load %arg1[%c26] : memref<30xf32, #tpu.memory_space<smem>>
    %134 = vector.broadcast %133 : f32 to vector<2x16x18xf32>
    %135 = arith.mulf %125, %134 : vector<2x16x18xf32>
    %136 = arith.addf %132, %135 : vector<2x16x18xf32>
    %137 = arith.addf %108, %136 : vector<2x16x18xf32>
    %c27 = arith.constant 27 : index
    %138 = memref.load %arg1[%c27] : memref<30xf32, #tpu.memory_space<smem>>
    %139 = vector.broadcast %138 : f32 to vector<2x16x18xf32>
    %140 = arith.mulf %123, %139 : vector<2x16x18xf32>
    %c28 = arith.constant 28 : index
    %141 = memref.load %arg1[%c28] : memref<30xf32, #tpu.memory_space<smem>>
    %142 = vector.broadcast %141 : f32 to vector<2x16x18xf32>
    %143 = arith.mulf %124, %142 : vector<2x16x18xf32>
    %144 = arith.addf %140, %143 : vector<2x16x18xf32>
    %c29 = arith.constant 29 : index
    %145 = memref.load %arg1[%c29] : memref<30xf32, #tpu.memory_space<smem>>
    %146 = vector.broadcast %145 : f32 to vector<2x16x18xf32>
    %147 = arith.mulf %125, %146 : vector<2x16x18xf32>
    %148 = arith.addf %144, %147 : vector<2x16x18xf32>
    %149 = arith.addf %120, %148 : vector<2x16x18xf32>
    %150 = vector.shape_cast %137 : vector<2x16x18xf32> to vector<2x16x1x18xf32>
    %151 = vector.shape_cast %149 : vector<2x16x18xf32> to vector<2x16x1x18xf32>
    %152 = tpu.concatenate %150, %151 in 2 : vector<2x16x1x18xf32>, vector<2x16x1x18xf32> -> vector<2x16x2x18xf32>
    %153 = vector.shape_cast %152 : vector<2x16x2x18xf32> to vector<2x1x32x18xf32>
    %cst_6 = arith.constant 0.000000e+00 : f32
    %154 = vector.broadcast %cst_6 : f32 to vector<2x1x32x18xf32>
    %155 = arith.cmpf ogt, %153, %154 : vector<2x1x32x18xf32>
    %cst_7 = arith.constant 1.650000e-01 : f32
    %156 = vector.broadcast %cst_7 : f32 to vector<2x1x32x18xf32>
    %157 = arith.mulf %153, %156 : vector<2x1x32x18xf32>
    %158 = arith.select %155, %153, %157 : vector<2x1x32x18xi1>, vector<2x1x32x18xf32>
    %c0_8 = arith.constant 0 : index
    %c0_9 = arith.constant 0 : index
    %c0_10 = arith.constant 0 : index
    %c0_11 = arith.constant 0 : index
    %159 = vector.load %arg4[%c0_8, %c0_9, %c0_10, %c0_11] : memref<2x1x32x18xf32, #tpu.memory_space<vmem>>, vector<2x1x32x18xf32>
    tpu.vector_store %arg4[%c0_8, %c0_9, %c0_10, %c0_11], %158 {strides = array<i32>} : memref<2x1x32x18xf32, #tpu.memory_space<vmem>>, vector<2x1x32x18xf32>,
    return
  }
  func.func @transform_0(%arg0: i32) -> i32 {
    %c0_i32 = arith.constant 0 : i32
    %c0_i32_0 = arith.constant 0 : i32
    return %c0_i32 : i32
  }
  func.func @transform_1(%arg0: i32) -> i32 {
    %c0_i32 = arith.constant 0 : i32
    %c0_i32_0 = arith.constant 0 : i32
    return %c0_i32 : i32
  }
  func.func @transform_2(%arg0: i32) -> (i32, i32, i32, i32) {
    %c0_i32 = arith.constant 0 : i32
    %c0_i32_0 = arith.constant 0 : i32
    %c0_i32_1 = arith.constant 0 : i32
    %c0_i32_2 = arith.constant 0 : i32
    return %arg0, %c0_i32, %c0_i32_0, %c0_i32_1 : i32, i32, i32, i32
  }
  func.func @transform_3(%arg0: i32) -> (i32, i32, i32, i32) {
    %c0_i32 = arith.constant 0 : i32
    %c0_i32_0 = arith.constant 0 : i32
    %c0_i32_1 = arith.constant 0 : i32
    %c0_i32_2 = arith.constant 0 : i32
    return %arg0, %c0_i32, %c0_i32_0, %c0_i32_1 : i32, i32, i32, i32
  }
}

</mosaic_0001>

<llo_original>
// kernel: tpu_custom_call.1
$region0: #{tpu_custom_call.1}
  #allocation0 [shape = 'u32[]', space=smem, size = 0x4, offset = 0x4, fixed_abs, tag = 'smem constant byte address 0x4 - core index']
  #allocation1 [shape = 'u32[72,128]{1,0:T(1,128)}', space=vmem, size = 0x9000, scoped, tag = 'internal scratch']
  #allocation2 [shape = 'f32[1]{0:T(128)S(6)}', space=smem, size = 0x200, scoped, tag = 'scoped memory for tpu_custom_call.1']
  %s0 = inlined_call_operand.vmem [shape: f32[30], index: 0, kind: input, shape index: {}]
  %s1 = inlined_call_operand.<no memory space> [shape: f32[1], index: 1, kind: input, shape index: {}]
  %s2 = inlined_call_operand.hbm [shape: f32[2,5,16,16], index: 2, kind: input, shape index: {}]
  %s3 = inlined_call_operand.vmem [shape: f32[2,1,32,18], index: 3, kind: output, shape index: {}]
  %s4 = sld [smem:[#allocation0]]
  $region30: #{tpu_custom_call.1} parent=0
    _
  %s6 = ssub.s32 1, %s4
  %s7 = scalar_select 0, %s6, %s4
  %8 = sst [smem:[#allocation2]] %s1
  $region1: #{tpu_custom_call.1} parent=0
    #allocation3 [shape = 'u8[512]{0}', space=smem, size = 0x200, scoped, tag = 'input window, operand 0, single buffered']
    #allocation4 [shape = 's32[1]{0}', space=sflag, size = 0x4, scoped, tag = 'scoped memory for tpu_custom_call.1']
    #allocation5 [shape = 's32[1]{0}', space=sflag, size = 0x4, scoped, tag = 'scoped memory for tpu_custom_call.1']
    #allocation6 [shape = 'u8[81920]{0}', space=vmem, size = 0x14000, scoped, tag = 'input window, operand 2, single buffered']
    %9 = vsyncpa [#allocation5], 0
    %10 = vsyncpa [#allocation4], 0
    // Predicated region
    $region2: #{tpu_custom_call.1} parent=1 // pred_check
      _
    $region3: #{tpu_custom_call.1} parent=1 // pred_check_branch
      %12 = sbr.rel (0) target = $region5
    $region4: #{tpu_custom_call.1} parent=1 // pred_region
      %14 = vsyncadd [#allocation5], 0
      %s16 = sshll.u32 %s0, 4
      %s17 = int_to_ptr.vmem [resolvable:$true] %s16
      %19 = dma.vmem_to_smem %s17, 16, [#allocation3], [#allocation5]
    $region5: #{tpu_custom_call.1} parent=1 // pred_fallthru
      _
    // Predicated region
    $region6: #{tpu_custom_call.1} parent=1 // pred_check
      _
    $region7: #{tpu_custom_call.1} parent=1 // pred_check_branch
      %21 = sbr.rel (0) target = $region9
    $region8: #{tpu_custom_call.1} parent=1 // pred_region
      _
    $region9: #{tpu_custom_call.1} parent=1 // pred_fallthru
      _
    // Predicated region
    $region10: #{tpu_custom_call.1} parent=1 // pred_check
      _
    $region11: #{tpu_custom_call.1} parent=1 // pred_check_branch
      %23 = sbr.rel (0) target = $region13
    $region12: #{tpu_custom_call.1} parent=1 // pred_region
      %25 = vsyncadd [#allocation4], 0
      %s26 = sshll.u32 %s2, 4
      %s27 = int_to_ptr.hbm [resolvable:$true] %s26
      %s28 = sshll.u32 [#allocation6], 4
      %s29 = int_to_ptr.vmem [resolvable:$true] %s28
      %34 = dma.hbm_to_vmem [thread:$0]  %s27, 2560, %s29, [#allocation4], 128, 128, 8
    $region13: #{tpu_custom_call.1} parent=1 // pred_fallthru
      _
    // Predicated region
    $region14: #{tpu_custom_call.1} parent=1 // pred_check
      _
    $region15: #{tpu_custom_call.1} parent=1 // pred_check_branch
      %36 = sbr.rel (0) target = $region17
    $region16: #{tpu_custom_call.1} parent=1 // pred_region
      %38 = dma.done [#allocation5], 16
    $region17: #{tpu_custom_call.1} parent=1 // pred_fallthru
      _
    // Predicated region
    $region18: #{tpu_custom_call.1} parent=1 // pred_check
      _
    $region19: #{tpu_custom_call.1} parent=1 // pred_check_branch
      %40 = sbr.rel (0) target = $region21
    $region20: #{tpu_custom_call.1} parent=1 // pred_region
      %42 = dma.done [#allocation4], 2560
    $region21: #{tpu_custom_call.1} parent=1 // pred_fallthru
      _
    %43 = sfence
    %v44 = vld [vmem:[#allocation6] sm:$0xff]
    %v45 = vld [vmem:[#allocation6 + $0x8] sm:$0xff]
    %v46 = vld [vmem:[#allocation6 + $0x10] sm:$0xff]
    %v47 = vld [vmem:[#allocation6 + $0x18] sm:$0xff]
    %v48 = vld [vmem:[#allocation6 + $0x20] sm:$0xff]
    %v49 = vld [vmem:[#allocation6 + $0x28] sm:$0xff]
    %v50 = vld [vmem:[#allocation6 + $0x30] sm:$0xff]
    %v51 = vld [vmem:[#allocation6 + $0x38] sm:$0xff]
    %v52 = vld [vmem:[#allocation6 + $0x40] sm:$0xff]
    %v53 = vld [vmem:[#allocation6 + $0x48] sm:$0xff]
    %v54 = vld [vmem:[#allocation6 + $0x50] sm:$0xff]
    %v55 = vld [vmem:[#allocation6 + $0x58] sm:$0xff]
    %v56 = vld [vmem:[#allocation6 + $0x60] sm:$0xff]
    %v57 = vld [vmem:[#allocation6 + $0x68] sm:$0xff]
    %v58 = vld [vmem:[#allocation6 + $0x70] sm:$0xff]
    %v59 = vld [vmem:[#allocation6 + $0x78] sm:$0xff]
    %v60 = vld [vmem:[#allocation6 + $0x80] sm:$0xff]
    %v61 = vld [vmem:[#allocation6 + $0x88] sm:$0xff]
    %v62 = vld [vmem:[#allocation6 + $0x90] sm:$0xff]
    %v63 = vld [vmem:[#allocation6 + $0x98] sm:$0xff]
    %s64 = sld [smem:[#allocation2]]
    %v65 = vstv %s64
    %70 = vrot.lane.b32.xlu0 %v44, 2
    %v71 = vpop.permute.xlu0 %70
    %72 = vrot.lane.b32.xlu0 %v45, 2
    %v73 = vpop.permute.xlu0 %72
    %74 = vrot.lane.b32.xlu0 %v54, 2
    %v75 = vpop.permute.xlu0 %74
    %76 = vrot.lane.b32.xlu0 %v55, 2
    %v77 = vpop.permute.xlu0 %76
    %vm82 = vcmask 15360
    %v83 = vsel %vm82, 0.0, %v71
    %v84 = vsel %vm82, 0.0, %v73
    %v85 = vsel %vm82, 0.0, %v75
    %v86 = vsel %vm82, 0.0, %v77
    %87 = vrot.lane.b32.xlu0 %v44, 1
    %v88 = vpop.permute.xlu0 %87
    %89 = vrot.lane.b32.xlu0 %v45, 1
    %v90 = vpop.permute.xlu0 %89
    %91 = vrot.lane.b32.xlu0 %v54, 1
    %v92 = vpop.permute.xlu0 %91
    %93 = vrot.lane.b32.xlu0 %v55, 1
    %v94 = vpop.permute.xlu0 %93
    %vm99 = vcmask 7168
    %v100 = vsel %vm99, 0.0, %v88
    %v101 = vsel %vm99, 0.0, %v90
    %v102 = vsel %vm99, 0.0, %v92
    %v103 = vsel %vm99, 0.0, %v94
    %vm104 = vcmask 138240
    %v105 = vsel %vm104, %v100, 0.0
    %v106 = vsel %vm104, %v101, 0.0
    %v107 = vsel %vm104, %v102, 0.0
    %v108 = vsel %vm104, %v103, 0.0
    %vm109 = vcmask 130048
    %v110 = vsel %vm109, %v44, 0.0
    %v111 = vsel %vm109, %v45, 0.0
    %v112 = vsel %vm109, %v54, 0.0
    %v113 = vsel %vm109, %v55, 0.0
    %s114 = sld [smem:[#allocation3]]
    %v115 = vstv %s114
    %v116 = vmul.f32 %v83, %v115
    %v117 = vmul.f32 %v84, %v115
    %v118 = vmul.f32 %v85, %v115
    %v119 = vmul.f32 %v86, %v115
    %s120 = sld [smem:[#allocation3 + $0x1]]
    %v121 = vstv %s120
    %v122 = vmul.f32 %v105, %v121
    %v123 = vmul.f32 %v106, %v121
    %v124 = vmul.f32 %v107, %v121
    %v125 = vmul.f32 %v108, %v121
    %v126 = vadd.f32 %v116, %v122
    %v127 = vadd.f32 %v117, %v123
    %v128 = vadd.f32 %v118, %v124
    %v129 = vadd.f32 %v119, %v125
    %s130 = sld [smem:[#allocation3 + $0x2]]
    %v131 = vstv %s130
    %v132 = vmul.f32 %v110, %v131
    %v133 = vmul.f32 %v111, %v131
    %v134 = vmul.f32 %v112, %v131
    %v135 = vmul.f32 %v113, %v131
    %v136 = vadd.f32 %v126, %v132
    %v137 = vadd.f32 %v127, %v133
    %v138 = vadd.f32 %v128, %v134
    %v139 = vadd.f32 %v129, %v135
    %v140 = vadd.f32 %v65, %v136
    %v141 = vadd.f32 %v65, %v137
    %v142 = vadd.f32 %v65, %v138
    %v143 = vadd.f32 %v65, %v139
    %s144 = sld [smem:[#allocation3 + $0x3]]
    %v145 = vstv %s144
    %v146 = vmul.f32 %v83, %v145
    %v147 = vmul.f32 %v84, %v145
    %v148 = vmul.f32 %v85, %v145
    %v149 = vmul.f32 %v86, %v145
    %s150 = sld [smem:[#allocation3 + $0x4]]
    %v151 = vstv %s150
    %v152 = vmul.f32 %v105, %v151
    %v153 = vmul.f32 %v106, %v151
    %v154 = vmul.f32 %v107, %v151
    %v155 = vmul.f32 %v108, %v151
    %v156 = vadd.f32 %v146, %v152
    %v157 = vadd.f32 %v147, %v153
    %v158 = vadd.f32 %v148, %v154
    %v159 = vadd.f32 %v149, %v155
    %s160 = sld [smem:[#allocation3 + $0x5]]
    %v161 = vstv %s160
    %v162 = vmul.f32 %v110, %v161
    %v163 = vmul.f32 %v111, %v161
    %v164 = vmul.f32 %v112, %v161
    %v165 = vmul.f32 %v113, %v161
    %v166 = vadd.f32 %v156, %v162
    %v167 = vadd.f32 %v157, %v163
    %v168 = vadd.f32 %v158, %v164
    %v169 = vadd.f32 %v159, %v165
    %v170 = vadd.f32 %v65, %v166
    %v171 = vadd.f32 %v65, %v167
    %v172 = vadd.f32 %v65, %v168
    %v173 = vadd.f32 %v65, %v169
    %178 = vrot.lane.b32.xlu0 %v46, 2
    %v179 = vpop.permute.xlu0 %178
    %180 = vrot.lane.b32.xlu0 %v47, 2
    %v181 = vpop.permute.xlu0 %180
    %182 = vrot.lane.b32.xlu0 %v56, 2
    %v183 = vpop.permute.xlu0 %182
    %184 = vrot.lane.b32.xlu0 %v57, 2
    %v185 = vpop.permute.xlu0 %184
    %v190 = vsel %vm82, 0.0, %v179
    %v191 = vsel %vm82, 0.0, %v181
    %v192 = vsel %vm82, 0.0, %v183
    %v193 = vsel %vm82, 0.0, %v185
    %194 = vrot.lane.b32.xlu0 %v46, 1
    %v195 = vpop.permute.xlu0 %194
    %196 = vrot.lane.b32.xlu0 %v47, 1
    %v197 = vpop.permute.xlu0 %196
    %198 = vrot.lane.b32.xlu0 %v56, 1
    %v199 = vpop.permute.xlu0 %198
    %200 = vrot.lane.b32.xlu0 %v57, 1
    %v201 = vpop.permute.xlu0 %200
    %v206 = vsel %vm99, 0.0, %v195
    %v207 = vsel %vm99, 0.0, %v197
    %v208 = vsel %vm99, 0.0, %v199
    %v209 = vsel %vm99, 0.0, %v201
    %v210 = vsel %vm104, %v206, 0.0
    %v211 = vsel %vm104, %v207, 0.0
    %v212 = vsel %vm104, %v208, 0.0
    %v213 = vsel %vm104, %v209, 0.0
    %v214 = vsel %vm109, %v46, 0.0
    %v215 = vsel %vm109, %v47, 0.0
    %v216 = vsel %vm109, %v56, 0.0
    %v217 = vsel %vm109, %v57, 0.0
    %s218 = sld [smem:[#allocation3 + $0x6]]
    %v219 = vstv %s218
    %v220 = vmul.f32 %v190, %v219
    %v221 = vmul.f32 %v191, %v219
    %v222 = vmul.f32 %v192, %v219
    %v223 = vmul.f32 %v193, %v219
    %s224 = sld [smem:[#allocation3 + $0x7]]
    %v225 = vstv %s224
    %v226 = vmul.f32 %v210, %v225
    %v227 = vmul.f32 %v211, %v225
    %v228 = vmul.f32 %v212, %v225
    %v229 = vmul.f32 %v213, %v225
    %v230 = vadd.f32 %v220, %v226
    %v231 = vadd.f32 %v221, %v227
    %v232 = vadd.f32 %v222, %v228
    %v233 = vadd.f32 %v223, %v229
    %s234 = sld [smem:[#allocation3 + $0x8]]
    %v235 = vstv %s234
    %v236 = vmul.f32 %v214, %v235
    %v237 = vmul.f32 %v215, %v235
    %v238 = vmul.f32 %v216, %v235
    %v239 = vmul.f32 %v217, %v235
    %v240 = vadd.f32 %v230, %v236
    %v241 = vadd.f32 %v231, %v237
    %v242 = vadd.f32 %v232, %v238
    %v243 = vadd.f32 %v233, %v239
    %v244 = vadd.f32 %v140, %v240
    %v245 = vadd.f32 %v141, %v241
    %v246 = vadd.f32 %v142, %v242
    %v247 = vadd.f32 %v143, %v243
    %s248 = sld [smem:[#allocation3 + $0x9]]
    %v249 = vstv %s248
    %v250 = vmul.f32 %v190, %v249
    %v251 = vmul.f32 %v191, %v249
    %v252 = vmul.f32 %v192, %v249
    %v253 = vmul.f32 %v193, %v249
    %s254 = sld [smem:[#allocation3 + $0xa]]
    %v255 = vstv %s254
    %v256 = vmul.f32 %v210, %v255
    %v257 = vmul.f32 %v211, %v255
    %v258 = vmul.f32 %v212, %v255
    %v259 = vmul.f32 %v213, %v255
    %v260 = vadd.f32 %v250, %v256
    %v261 = vadd.f32 %v251, %v257
    %v262 = vadd.f32 %v252, %v258
    %v263 = vadd.f32 %v253, %v259
    %s264 = sld [smem:[#allocation3 + $0xb]]
    %v265 = vstv %s264
    %v266 = vmul.f32 %v214, %v265
    %v267 = vmul.f32 %v215, %v265
    %v268 = vmul.f32 %v216, %v265
    %v269 = vmul.f32 %v217, %v265
    %v270 = vadd.f32 %v260, %v266
    %v271 = vadd.f32 %v261, %v267
    %v272 = vadd.f32 %v262, %v268
    %v273 = vadd.f32 %v263, %v269
    %v274 = vadd.f32 %v170, %v270
    %v275 = vadd.f32 %v171, %v271
    %v276 = vadd.f32 %v172, %v272
    %v277 = vadd.f32 %v173, %v273
    %282 = vrot.lane.b32.xlu0 %v48, 2
    %v283 = vpop.permute.xlu0 %282
    %284 = vrot.lane.b32.xlu0 %v49, 2
    %v285 = vpop.permute.xlu0 %284
    %286 = vrot.lane.b32.xlu0 %v58, 2
    %v287 = vpop.permute.xlu0 %286
    %288 = vrot.lane.b32.xlu0 %v59, 2
    %v289 = vpop.permute.xlu0 %288
    %v294 = vsel %vm82, 0.0, %v283
    %v295 = vsel %vm82, 0.0, %v285
    %v296 = vsel %vm82, 0.0, %v287
    %v297 = vsel %vm82, 0.0, %v289
    %298 = vrot.lane.b32.xlu0 %v48, 1
    %v299 = vpop.permute.xlu0 %298
    %300 = vrot.lane.b32.xlu0 %v49, 1
    %v301 = vpop.permute.xlu0 %300
    %302 = vrot.lane.b32.xlu0 %v58, 1
    %v303 = vpop.permute.xlu0 %302
    %304 = vrot.lane.b32.xlu0 %v59, 1
    %v305 = vpop.permute.xlu0 %304
    %v310 = vsel %vm99, 0.0, %v299
    %v311 = vsel %vm99, 0.0, %v301
    %v312 = vsel %vm99, 0.0, %v303
    %v313 = vsel %vm99, 0.0, %v305
    %v314 = vsel %vm104, %v310, 0.0
    %v315 = vsel %vm104, %v311, 0.0
    %v316 = vsel %vm104, %v312, 0.0
    %v317 = vsel %vm104, %v313, 0.0
    %v318 = vsel %vm109, %v48, 0.0
    %v319 = vsel %vm109, %v49, 0.0
    %v320 = vsel %vm109, %v58, 0.0
    %v321 = vsel %vm109, %v59, 0.0
    %s322 = sld [smem:[#allocation3 + $0xc]]
    %v323 = vstv %s322
    %v324 = vmul.f32 %v294, %v323
    %v325 = vmul.f32 %v295, %v323
    %v326 = vmul.f32 %v296, %v323
    %v327 = vmul.f32 %v297, %v323
    %s328 = sld [smem:[#allocation3 + $0xd]]
    %v329 = vstv %s328
    %v330 = vmul.f32 %v314, %v329
    %v331 = vmul.f32 %v315, %v329
    %v332 = vmul.f32 %v316, %v329
    %v333 = vmul.f32 %v317, %v329
    %v334 = vadd.f32 %v324, %v330
    %v335 = vadd.f32 %v325, %v331
    %v336 = vadd.f32 %v326, %v332
    %v337 = vadd.f32 %v327, %v333
    %s338 = sld [smem:[#allocation3 + $0xe]]
    %v339 = vstv %s338
    %v340 = vmul.f32 %v318, %v339
    %v341 = vmul.f32 %v319, %v339
    %v342 = vmul.f32 %v320, %v339
    %v343 = vmul.f32 %v321, %v339
    %v344 = vadd.f32 %v334, %v340
    %v345 = vadd.f32 %v335, %v341
    %v346 = vadd.f32 %v336, %v342
    %v347 = vadd.f32 %v337, %v343
    %v348 = vadd.f32 %v244, %v344
    %v349 = vadd.f32 %v245, %v345
    %v350 = vadd.f32 %v246, %v346
    %v351 = vadd.f32 %v247, %v347
    %s352 = sld [smem:[#allocation3 + $0xf]]
    %v353 = vstv %s352
    %v354 = vmul.f32 %v294, %v353
    %v355 = vmul.f32 %v295, %v353
    %v356 = vmul.f32 %v296, %v353
    %v357 = vmul.f32 %v297, %v353
    %s358 = sld [smem:[#allocation3 + $0x10]]
    %v359 = vstv %s358
    %v360 = vmul.f32 %v314, %v359
    %v361 = vmul.f32 %v315, %v359
    %v362 = vmul.f32 %v316, %v359
    %v363 = vmul.f32 %v317, %v359
    %v364 = vadd.f32 %v354, %v360
    %v365 = vadd.f32 %v355, %v361
    %v366 = vadd.f32 %v356, %v362
    %v367 = vadd.f32 %v357, %v363
    %s368 = sld [smem:[#allocation3 + $0x11]]
    %v369 = vstv %s368
    %v370 = vmul.f32 %v318, %v369
    %v371 = vmul.f32 %v319, %v369
    %v372 = vmul.f32 %v320, %v369
    %v373 = vmul.f32 %v321, %v369
    %v374 = vadd.f32 %v364, %v370
    %v375 = vadd.f32 %v365, %v371
    %v376 = vadd.f32 %v366, %v372
    %v377 = vadd.f32 %v367, %v373
    %v378 = vadd.f32 %v274, %v374
    %v379 = vadd.f32 %v275, %v375
    %v380 = vadd.f32 %v276, %v376
    %v381 = vadd.f32 %v277, %v377
    %386 = vrot.lane.b32.xlu0 %v50, 2
    %v387 = vpop.permute.xlu0 %386
    %388 = vrot.lane.b32.xlu0 %v51, 2
    %v389 = vpop.permute.xlu0 %388
    %390 = vrot.lane.b32.xlu0 %v60, 2
    %v391 = vpop.permute.xlu0 %390
    %392 = vrot.lane.b32.xlu0 %v61, 2
    %v393 = vpop.permute.xlu0 %392
    %v398 = vsel %vm82, 0.0, %v387
    %v399 = vsel %vm82, 0.0, %v389
    %v400 = vsel %vm82, 0.0, %v391
    %v401 = vsel %vm82, 0.0, %v393
    %402 = vrot.lane.b32.xlu0 %v50, 1
    %v403 = vpop.permute.xlu0 %402
    %404 = vrot.lane.b32.xlu0 %v51, 1
    %v405 = vpop.permute.xlu0 %404
    %406 = vrot.lane.b32.xlu0 %v60, 1
    %v407 = vpop.permute.xlu0 %406
    %408 = vrot.lane.b32.xlu0 %v61, 1
    %v409 = vpop.permute.xlu0 %408
    %v414 = vsel %vm99, 0.0, %v403
    %v415 = vsel %vm99, 0.0, %v405
    %v416 = vsel %vm99, 0.0, %v407
    %v417 = vsel %vm99, 0.0, %v409
    %v418 = vsel %vm104, %v414, 0.0
    %v419 = vsel %vm104, %v415, 0.0
    %v420 = vsel %vm104, %v416, 0.0
    %v421 = vsel %vm104, %v417, 0.0
    %v422 = vsel %vm109, %v50, 0.0
    %v423 = vsel %vm109, %v51, 0.0
    %v424 = vsel %vm109, %v60, 0.0
    %v425 = vsel %vm109, %v61, 0.0
    %s426 = sld [smem:[#allocation3 + $0x12]]
    %v427 = vstv %s426
    %v428 = vmul.f32 %v398, %v427
    %v429 = vmul.f32 %v399, %v427
    %v430 = vmul.f32 %v400, %v427
    %v431 = vmul.f32 %v401, %v427
    %s432 = sld [smem:[#allocation3 + $0x13]]
    %v433 = vstv %s432
    %v434 = vmul.f32 %v418, %v433
    %v435 = vmul.f32 %v419, %v433
    %v436 = vmul.f32 %v420, %v433
    %v437 = vmul.f32 %v421, %v433
    %v438 = vadd.f32 %v428, %v434
    %v439 = vadd.f32 %v429, %v435
    %v440 = vadd.f32 %v430, %v436
    %v441 = vadd.f32 %v431, %v437
    %s442 = sld [smem:[#allocation3 + $0x14]]
    %v443 = vstv %s442
    %v444 = vmul.f32 %v422, %v443
    %v445 = vmul.f32 %v423, %v443
    %v446 = vmul.f32 %v424, %v443
    %v447 = vmul.f32 %v425, %v443
    %v448 = vadd.f32 %v438, %v444
    %v449 = vadd.f32 %v439, %v445
    %v450 = vadd.f32 %v440, %v446
    %v451 = vadd.f32 %v441, %v447
    %v452 = vadd.f32 %v348, %v448
    %v453 = vadd.f32 %v349, %v449
    %v454 = vadd.f32 %v350, %v450
    %v455 = vadd.f32 %v351, %v451
    %s456 = sld [smem:[#allocation3 + $0x15]]
    %v457 = vstv %s456
    %v458 = vmul.f32 %v398, %v457
    %v459 = vmul.f32 %v399, %v457
    %v460 = vmul.f32 %v400, %v457
    %v461 = vmul.f32 %v401, %v457
    %s462 = sld [smem:[#allocation3 + $0x16]]
    %v463 = vstv %s462
    %v464 = vmul.f32 %v418, %v463
    %v465 = vmul.f32 %v419, %v463
    %v466 = vmul.f32 %v420, %v463
    %v467 = vmul.f32 %v421, %v463
    %v468 = vadd.f32 %v458, %v464
    %v469 = vadd.f32 %v459, %v465
    %v470 = vadd.f32 %v460, %v466
    %v471 = vadd.f32 %v461, %v467
    %s472 = sld [smem:[#allocation3 + $0x17]]
    %v473 = vstv %s472
    %v474 = vmul.f32 %v422, %v473
    %v475 = vmul.f32 %v423, %v473
    %v476 = vmul.f32 %v424, %v473
    %v477 = vmul.f32 %v425, %v473
    %v478 = vadd.f32 %v468, %v474
    %v479 = vadd.f32 %v469, %v475
    %v480 = vadd.f32 %v470, %v476
    %v481 = vadd.f32 %v471, %v477
    %v482 = vadd.f32 %v378, %v478
    %v483 = vadd.f32 %v379, %v479
    %v484 = vadd.f32 %v380, %v480
    %v485 = vadd.f32 %v381, %v481
    %490 = vrot.lane.b32.xlu0 %v52, 2
    %v491 = vpop.permute.xlu0 %490
    %492 = vrot.lane.b32.xlu0 %v53, 2
    %v493 = vpop.permute.xlu0 %492
    %494 = vrot.lane.b32.xlu0 %v62, 2
    %v495 = vpop.permute.xlu0 %494
    %496 = vrot.lane.b32.xlu0 %v63, 2
    %v497 = vpop.permute.xlu0 %496
    %v502 = vsel %vm82, 0.0, %v491
    %v503 = vsel %vm82, 0.0, %v493
    %v504 = vsel %vm82, 0.0, %v495
    %v505 = vsel %vm82, 0.0, %v497
    %506 = vrot.lane.b32.xlu0 %v52, 1
    %v507 = vpop.permute.xlu0 %506
    %508 = vrot.lane.b32.xlu0 %v53, 1
    %v509 = vpop.permute.xlu0 %508
    %510 = vrot.lane.b32.xlu0 %v62, 1
    %v511 = vpop.permute.xlu0 %510
    %512 = vrot.lane.b32.xlu0 %v63, 1
    %v513 = vpop.permute.xlu0 %512
    %v518 = vsel %vm99, 0.0, %v507
    %v519 = vsel %vm99, 0.0, %v509
    %v520 = vsel %vm99, 0.0, %v511
    %v521 = vsel %vm99, 0.0, %v513
    %v522 = vsel %vm104, %v518, 0.0
    %v523 = vsel %vm104, %v519, 0.0
    %v524 = vsel %vm104, %v520, 0.0
    %v525 = vsel %vm104, %v521, 0.0
    %v526 = vsel %vm109, %v52, 0.0
    %v527 = vsel %vm109, %v53, 0.0
    %v528 = vsel %vm109, %v62, 0.0
    %v529 = vsel %vm109, %v63, 0.0
    %s530 = sld [smem:[#allocation3 + $0x18]]
    %v531 = vstv %s530
    %v532 = vmul.f32 %v502, %v531
    %v533 = vmul.f32 %v503, %v531
    %v534 = vmul.f32 %v504, %v531
    %v535 = vmul.f32 %v505, %v531
    %s536 = sld [smem:[#allocation3 + $0x19]]
    %v537 = vstv %s536
    %v538 = vmul.f32 %v522, %v537
    %v539 = vmul.f32 %v523, %v537
    %v540 = vmul.f32 %v524, %v537
    %v541 = vmul.f32 %v525, %v537
    %v542 = vadd.f32 %v532, %v538
    %v543 = vadd.f32 %v533, %v539
    %v544 = vadd.f32 %v534, %v540
    %v545 = vadd.f32 %v535, %v541
    %s546 = sld [smem:[#allocation3 + $0x1a]]
    %v547 = vstv %s546
    %v548 = vmul.f32 %v526, %v547
    %v549 = vmul.f32 %v527, %v547
    %v550 = vmul.f32 %v528, %v547
    %v551 = vmul.f32 %v529, %v547
    %v552 = vadd.f32 %v542, %v548
    %v553 = vadd.f32 %v543, %v549
    %v554 = vadd.f32 %v544, %v550
    %v555 = vadd.f32 %v545, %v551
    %v556 = vadd.f32 %v452, %v552
    %v557 = vadd.f32 %v453, %v553
    %v558 = vadd.f32 %v454, %v554
    %v559 = vadd.f32 %v455, %v555
    %s560 = sld [smem:[#allocation3 + $0x1b]]
    %v561 = vstv %s560
    %v562 = vmul.f32 %v502, %v561
    %v563 = vmul.f32 %v503, %v561
    %v564 = vmul.f32 %v504, %v561
    %v565 = vmul.f32 %v505, %v561
    %s566 = sld [smem:[#allocation3 + $0x1c]]
    %v567 = vstv %s566
    %v568 = vmul.f32 %v522, %v567
    %v569 = vmul.f32 %v523, %v567
    %v570 = vmul.f32 %v524, %v567
    %v571 = vmul.f32 %v525, %v567
    %v572 = vadd.f32 %v562, %v568
    %v573 = vadd.f32 %v563, %v569
    %v574 = vadd.f32 %v564, %v570
    %v575 = vadd.f32 %v565, %v571
    %s576 = sld [smem:[#allocation3 + $0x1d]]
    %v577 = vstv %s576
    %v578 = vmul.f32 %v526, %v577
    %v579 = vmul.f32 %v527, %v577
    %v580 = vmul.f32 %v528, %v577
    %v581 = vmul.f32 %v529, %v577
    %v582 = vadd.f32 %v572, %v578
    %v583 = vadd.f32 %v573, %v579
    %v584 = vadd.f32 %v574, %v580
    %v585 = vadd.f32 %v575, %v581
    %v586 = vadd.f32 %v482, %v582
    %v587 = vadd.f32 %v483, %v583
    %v588 = vadd.f32 %v484, %v584
    %v589 = vadd.f32 %v485, %v585
    %v594 = vrot.slane %v556, 1
    %v595 = vrot.slane %v556, 2
    %v596 = vrot.slane %v556, 3
    %v597 = vrot.slane %v556, 4
    %v598 = vrot.slane %v556, 5
    %v599 = vrot.slane %v556, 6
    %v600 = vrot.slane %v556, 7
    %v601 = vrot.slane %v557, 1
    %v602 = vrot.slane %v557, 2
    %v603 = vrot.slane %v557, 3
    %v604 = vrot.slane %v557, 4
    %v605 = vrot.slane %v557, 5
    %v606 = vrot.slane %v557, 6
    %v607 = vrot.slane %v557, 7
    %v608 = vrot.slane %v558, 1
    %v609 = vrot.slane %v558, 2
    %v610 = vrot.slane %v558, 3
    %v611 = vrot.slane %v558, 4
    %v612 = vrot.slane %v558, 5
    %v613 = vrot.slane %v558, 6
    %v614 = vrot.slane %v558, 7
    %v615 = vrot.slane %v559, 1
    %v616 = vrot.slane %v559, 2
    %v617 = vrot.slane %v559, 3
    %v618 = vrot.slane %v559, 4
    %v619 = vrot.slane %v559, 5
    %v620 = vrot.slane %v559, 6
    %v621 = vrot.slane %v559, 7
    %v654 = vrot.slane %v586, 1
    %v655 = vrot.slane %v586, 2
    %v656 = vrot.slane %v586, 3
    %v657 = vrot.slane %v586, 4
    %v658 = vrot.slane %v586, 5
    %v659 = vrot.slane %v586, 6
    %v660 = vrot.slane %v586, 7
    %v661 = vrot.slane %v587, 1
    %v662 = vrot.slane %v587, 2
    %v663 = vrot.slane %v587, 3
    %v664 = vrot.slane %v587, 4
    %v665 = vrot.slane %v587, 5
    %v666 = vrot.slane %v587, 6
    %v667 = vrot.slane %v587, 7
    %v668 = vrot.slane %v588, 1
    %v669 = vrot.slane %v588, 2
    %v670 = vrot.slane %v588, 3
    %v671 = vrot.slane %v588, 4
    %v672 = vrot.slane %v588, 5
    %v673 = vrot.slane %v588, 6
    %v674 = vrot.slane %v588, 7
    %v675 = vrot.slane %v589, 1
    %v676 = vrot.slane %v589, 2
    %v677 = vrot.slane %v589, 3
    %v678 = vrot.slane %v589, 4
    %v679 = vrot.slane %v589, 5
    %v680 = vrot.slane %v589, 6
    %v681 = vrot.slane %v589, 7
    %v682 = vperm.slane %v586, 0
    %v683 = vperm.slane %v654, 0
    %v684 = vperm.slane %v655, 0
    %v685 = vperm.slane %v656, 0
    %v686 = vperm.slane %v657, 0
    %v687 = vperm.slane %v658, 0
    %v688 = vperm.slane %v659, 0
    %v689 = vperm.slane %v660, 0
    %v690 = vperm.slane %v587, 0
    %v691 = vperm.slane %v661, 0
    %v692 = vperm.slane %v662, 0
    %v693 = vperm.slane %v663, 0
    %v694 = vperm.slane %v664, 0
    %v695 = vperm.slane %v665, 0
    %v696 = vperm.slane %v666, 0
    %v697 = vperm.slane %v667, 0
    %v698 = vperm.slane %v588, 0
    %v699 = vperm.slane %v668, 0
    %v700 = vperm.slane %v669, 0
    %v701 = vperm.slane %v670, 0
    %v702 = vperm.slane %v671, 0
    %v703 = vperm.slane %v672, 0
    %v704 = vperm.slane %v673, 0
    %v705 = vperm.slane %v674, 0
    %v706 = vperm.slane %v589, 0
    %v707 = vperm.slane %v675, 0
    %v708 = vperm.slane %v676, 0
    %v709 = vperm.slane %v677, 0
    %v710 = vperm.slane %v678, 0
    %v711 = vperm.slane %v679, 0
    %v712 = vperm.slane %v680, 0
    %v713 = vperm.slane %v681, 0
    %vm746 = vcmask 1040384
    %v747 = vsel %vm746, %v556, %v682
    %v748 = vsel %vm746, %v594, %v683
    %v749 = vsel %vm746, %v595, %v684
    %v750 = vsel %vm746, %v596, %v685
    %v751 = vsel %vm746, %v597, %v686
    %v752 = vsel %vm746, %v598, %v687
    %v753 = vsel %vm746, %v599, %v688
    %v754 = vsel %vm746, %v600, %v689
    %v755 = vsel %vm746, %v557, %v690
    %v756 = vsel %vm746, %v601, %v691
    %v757 = vsel %vm746, %v602, %v692
    %v758 = vsel %vm746, %v603, %v693
    %v759 = vsel %vm746, %v604, %v694
    %v760 = vsel %vm746, %v605, %v695
    %v761 = vsel %vm746, %v606, %v696
    %v762 = vsel %vm746, %v607, %v697
    %v763 = vsel %vm746, %v558, %v698
    %v764 = vsel %vm746, %v608, %v699
    %v765 = vsel %vm746, %v609, %v700
    %v766 = vsel %vm746, %v610, %v701
    %v767 = vsel %vm746, %v611, %v702
    %v768 = vsel %vm746, %v612, %v703
    %v769 = vsel %vm746, %v613, %v704
    %v770 = vsel %vm746, %v614, %v705
    %v771 = vsel %vm746, %v559, %v706
    %v772 = vsel %vm746, %v615, %v707
    %v773 = vsel %vm746, %v616, %v708
    %v774 = vsel %vm746, %v617, %v709
    %v775 = vsel %vm746, %v618, %v710
    %v776 = vsel %vm746, %v619, %v711
    %v777 = vsel %vm746, %v620, %v712
    %v778 = vsel %vm746, %v621, %v713
    %vm779 = vcmp.gt.f32.partialorder %v747, 0.0
    %vm780 = vcmp.gt.f32.partialorder %v748, 0.0
    %vm781 = vcmp.gt.f32.partialorder %v749, 0.0
    %vm782 = vcmp.gt.f32.partialorder %v750, 0.0
    %vm783 = vcmp.gt.f32.partialorder %v751, 0.0
    %vm784 = vcmp.gt.f32.partialorder %v752, 0.0
    %vm785 = vcmp.gt.f32.partialorder %v753, 0.0
    %vm786 = vcmp.gt.f32.partialorder %v754, 0.0
    %vm787 = vcmp.gt.f32.partialorder %v755, 0.0
    %vm788 = vcmp.gt.f32.partialorder %v756, 0.0
    %vm789 = vcmp.gt.f32.partialorder %v757, 0.0
    %vm790 = vcmp.gt.f32.partialorder %v758, 0.0
    %vm791 = vcmp.gt.f32.partialorder %v759, 0.0
    %vm792 = vcmp.gt.f32.partialorder %v760, 0.0
    %vm793 = vcmp.gt.f32.partialorder %v761, 0.0
    %vm794 = vcmp.gt.f32.partialorder %v762, 0.0
    %vm795 = vcmp.gt.f32.partialorder %v763, 0.0
    %vm796 = vcmp.gt.f32.partialorder %v764, 0.0
    %vm797 = vcmp.gt.f32.partialorder %v765, 0.0
    %vm798 = vcmp.gt.f32.partialorder %v766, 0.0
    %vm799 = vcmp.gt.f32.partialorder %v767, 0.0
    %vm800 = vcmp.gt.f32.partialorder %v768, 0.0
    %vm801 = vcmp.gt.f32.partialorder %v769, 0.0
    %vm802 = vcmp.gt.f32.partialorder %v770, 0.0
    %vm803 = vcmp.gt.f32.partialorder %v771, 0.0
    %vm804 = vcmp.gt.f32.partialorder %v772, 0.0
    %vm805 = vcmp.gt.f32.partialorder %v773, 0.0
    %vm806 = vcmp.gt.f32.partialorder %v774, 0.0
    %vm807 = vcmp.gt.f32.partialorder %v775, 0.0
    %vm808 = vcmp.gt.f32.partialorder %v776, 0.0
    %vm809 = vcmp.gt.f32.partialorder %v777, 0.0
    %vm810 = vcmp.gt.f32.partialorder %v778, 0.0
    %v811 = vmul.f32 %v747, 0.165
    %v812 = vmul.f32 %v748, 0.165
    %v813 = vmul.f32 %v749, 0.165
    %v814 = vmul.f32 %v750, 0.165
    %v815 = vmul.f32 %v751, 0.165
    %v816 = vmul.f32 %v752, 0.165
    %v817 = vmul.f32 %v753, 0.165
    %v818 = vmul.f32 %v754, 0.165
    %v819 = vmul.f32 %v755, 0.165
    %v820 = vmul.f32 %v756, 0.165
    %v821 = vmul.f32 %v757, 0.165
    %v822 = vmul.f32 %v758, 0.165
    %v823 = vmul.f32 %v759, 0.165
    %v824 = vmul.f32 %v760, 0.165
    %v825 = vmul.f32 %v761, 0.165
    %v826 = vmul.f32 %v762, 0.165
    %v827 = vmul.f32 %v763, 0.165
    %v828 = vmul.f32 %v764, 0.165
    %v829 = vmul.f32 %v765, 0.165
    %v830 = vmul.f32 %v766, 0.165
    %v831 = vmul.f32 %v767, 0.165
    %v832 = vmul.f32 %v768, 0.165
    %v833 = vmul.f32 %v769, 0.165
    %v834 = vmul.f32 %v770, 0.165
    %v835 = vmul.f32 %v771, 0.165
    %v836 = vmul.f32 %v772, 0.165
    %v837 = vmul.f32 %v773, 0.165
    %v838 = vmul.f32 %v774, 0.165
    %v839 = vmul.f32 %v775, 0.165
    %v840 = vmul.f32 %v776, 0.165
    %v841 = vmul.f32 %v777, 0.165
    %v842 = vmul.f32 %v778, 0.165
    %v843 = vsel %vm779, %v747, %v811
    %v844 = vsel %vm780, %v748, %v812
    %v845 = vsel %vm781, %v749, %v813
    %v846 = vsel %vm782, %v750, %v814
    %v847 = vsel %vm783, %v751, %v815
    %v848 = vsel %vm784, %v752, %v816
    %v849 = vsel %vm785, %v753, %v817
    %v850 = vsel %vm786, %v754, %v818
    %v851 = vsel %vm787, %v755, %v819
    %v852 = vsel %vm788, %v756, %v820
    %v853 = vsel %vm789, %v757, %v821
    %v854 = vsel %vm790, %v758, %v822
    %v855 = vsel %vm791, %v759, %v823
    %v856 = vsel %vm792, %v760, %v824
    %v857 = vsel %vm793, %v761, %v825
    %v858 = vsel %vm794, %v762, %v826
    %v859 = vsel %vm795, %v763, %v827
    %v860 = vsel %vm796, %v764, %v828
    %v861 = vsel %vm797, %v765, %v829
    %v862 = vsel %vm798, %v766, %v830
    %v863 = vsel %vm799, %v767, %v831
    %v864 = vsel %vm800, %v768, %v832
    %v865 = vsel %vm801, %v769, %v833
    %v866 = vsel %vm802, %v770, %v834
    %v867 = vsel %vm803, %v771, %v835
    %v868 = vsel %vm804, %v772, %v836
    %v869 = vsel %vm805, %v773, %v837
    %v870 = vsel %vm806, %v774, %v838
    %v871 = vsel %vm807, %v775, %v839
    %v872 = vsel %vm808, %v776, %v840
    %v873 = vsel %vm809, %v777, %v841
    %v874 = vsel %vm810, %v778, %v842
    %907 = vst [vmem:[#allocation1] ss:$4 sm:$0xff] %v843
    %s908 = scalar_lea.vmem [#allocation1], 1
    %909 = vst [vmem:[%s908] ss:$4 sm:$0xff] %v844
    %s910 = scalar_lea.vmem [#allocation1], 2
    %911 = vst [vmem:[%s910] ss:$4 sm:$0xff] %v845
    %s912 = scalar_lea.vmem [#allocation1], 3
    %913 = vst [vmem:[%s912] ss:$4 sm:$0xff] %v846
    %s914 = scalar_lea.vmem [#allocation1], 32
    %915 = vst [vmem:[%s914] ss:$4 sm:$0xff] %v847
    %s916 = scalar_lea.vmem [#allocation1], 33
    %917 = vst [vmem:[%s916] ss:$4 sm:$0xff] %v848
    %s918 = scalar_lea.vmem [#allocation1], 34
    %919 = vst [vmem:[%s918] ss:$4 sm:$0xff] %v849
    %s920 = scalar_lea.vmem [#allocation1], 35
    %921 = vst [vmem:[%s920] ss:$4 sm:$0xff] %v850
    %v922 = vld.sshfl [vmem:[#allocation1] sm:$0xff pattern:$0x73625140]
    %v923 = vld.sshfl [vmem:[#allocation1 + $0x20] sm:$0xff pattern:$0x73625140]
    %924 = vst [vmem:[#allocation1] ss:$4 sm:$0xff] %v851
    %925 = vst [vmem:[%s908] ss:$4 sm:$0xff] %v852
    %926 = vst [vmem:[%s910] ss:$4 sm:$0xff] %v853
    %927 = vst [vmem:[%s912] ss:$4 sm:$0xff] %v854
    %928 = vst [vmem:[%s914] ss:$4 sm:$0xff] %v855
    %929 = vst [vmem:[%s916] ss:$4 sm:$0xff] %v856
    %930 = vst [vmem:[%s918] ss:$4 sm:$0xff] %v857
    %931 = vst [vmem:[%s920] ss:$4 sm:$0xff] %v858
    %v932 = vld.sshfl [vmem:[#allocation1] sm:$0xff pattern:$0x73625140]
    %v933 = vld.sshfl [vmem:[#allocation1 + $0x20] sm:$0xff pattern:$0x73625140]
    %934 = vst [vmem:[#allocation1] ss:$4 sm:$0xff] %v859
    %935 = vst [vmem:[%s908] ss:$4 sm:$0xff] %v860
    %936 = vst [vmem:[%s910] ss:$4 sm:$0xff] %v861
    %937 = vst [vmem:[%s912] ss:$4 sm:$0xff] %v862
    %938 = vst [vmem:[%s914] ss:$4 sm:$0xff] %v863
    %939 = vst [vmem:[%s916] ss:$4 sm:$0xff] %v864
    %940 = vst [vmem:[%s918] ss:$4 sm:$0xff] %v865
    %941 = vst [vmem:[%s920] ss:$4 sm:$0xff] %v866
    %v942 = vld.sshfl [vmem:[#allocation1] sm:$0xff pattern:$0x73625140]
    %v943 = vld.sshfl [vmem:[#allocation1 + $0x20] sm:$0xff pattern:$0x73625140]
    %944 = vst [vmem:[#allocation1] ss:$4 sm:$0xff] %v867
    %945 = vst [vmem:[%s908] ss:$4 sm:$0xff] %v868
    %946 = vst [vmem:[%s910] ss:$4 sm:$0xff] %v869
    %947 = vst [vmem:[%s912] ss:$4 sm:$0xff] %v870
    %948 = vst [vmem:[%s914] ss:$4 sm:$0xff] %v871
    %949 = vst [vmem:[%s916] ss:$4 sm:$0xff] %v872
    %950 = vst [vmem:[%s918] ss:$4 sm:$0xff] %v873
    %951 = vst [vmem:[%s920] ss:$4 sm:$0xff] %v874
    %v952 = vld.sshfl [vmem:[#allocation1] sm:$0xff pattern:$0x73625140]
    %v953 = vld.sshfl [vmem:[#allocation1 + $0x20] sm:$0xff pattern:$0x73625140]
    %vm962 = vcmask 146432
    %963 = vst.msk [vmem:[%s3] sm:$0xff] %vm962, %v922
    %964 = vst.msk [vmem:[%s3 + $0x8] sm:$0xff] %vm962, %v923
    %965 = vst.msk [vmem:[%s3 + $0x10] sm:$0xff] %vm962, %v932
    %966 = vst.msk [vmem:[%s3 + $0x18] sm:$0xff] %vm962, %v933
    %967 = vst.msk [vmem:[%s3 + $0x20] sm:$0xff] %vm962, %v942
    %968 = vst.msk [vmem:[%s3 + $0x28] sm:$0xff] %vm962, %v943
    %969 = vst.msk [vmem:[%s3 + $0x30] sm:$0xff] %vm962, %v952
    %970 = vst.msk [vmem:[%s3 + $0x38] sm:$0xff] %vm962, %v953
    // Predicated region
    $region22: #{tpu_custom_call.1} parent=1 // pred_check
      _
    $region23: #{tpu_custom_call.1} parent=1 // pred_check_branch
      %972 = sbr.rel (0) target = $region25
    $region24: #{tpu_custom_call.1} parent=1 // pred_region
      _
    $region25: #{tpu_custom_call.1} parent=1 // pred_fallthru
      _
    // Predicated region
    $region26: #{tpu_custom_call.1} parent=1 // pred_check
      _
    $region27: #{tpu_custom_call.1} parent=1 // pred_check_branch
      %974 = sbr.rel (0) target = $region29
    $region28: #{tpu_custom_call.1} parent=1 // pred_region
      _
    $region29: #{tpu_custom_call.1} parent=1 // pred_fallthru
      _
    %975 = vsyncpa [#allocation4], 1
    %976 = vsyncpa [#allocation5], 1

</llo_original>
